<compile_context>
chip_gen: v7x
topology: tpu7x:2x2x1
jax: 0.10.0
libtpu: 0.0.40
codegen_flags: <defaults>
</compile_context>

<pallas_src>
import functools
import math

import jax
import jax.numpy as jnp
from jax.experimental import pallas as pl
from jax.experimental.pallas import tpu as pltpu

EPS = 1e-3


def _round_up(x, m):
    return (x + m - 1) // m * m


def _default_max_row_tile():
    # v7x has 64 MiB VMEM per TensorCore (vs 128 MiB on v5e/v6e): use a smaller
    # row tile there so resident weights + double-buffered x/out tiles + the f32
    # hidden intermediate leave headroom.  256-512 rows already saturates the
    # MXU's M dimension, and >=2 grid steps lets the row grid shard across both
    # v7x TensorCores (dimension_semantics=("parallel",)).
    try:
        if pltpu.get_tpu_info().vmem_capacity_bytes <= (64 << 20):
            return 256
    except Exception:
        pass
    return 512


# ---------------------------------------------------------------------------
# Kernels
# ---------------------------------------------------------------------------

def _layernorm_residual(y, x_f32, g, beta, o_ref, *, eps, d_hid):
    """Residual add + LayerNormalization (unbiased std, eps added to sigma)."""
    y = y + x_f32
    mu = jnp.sum(y, axis=-1, keepdims=True) * jnp.float32(1.0 / d_hid)
    d = y - mu                                    # two-pass variance: matches
    var = jnp.sum(d * d, axis=-1, keepdims=True) * jnp.float32(1.0 / (d_hid - 1))
    denom = jnp.sqrt(var) + jnp.float32(eps)      # torch.std (unbiased) + eps
    inv = pl.reciprocal(denom, approx=True)       # EUP seed (separate VLIW slot)
    inv = inv * (2.0 - denom * inv)               # one Newton step -> ~f32-exact
    o_ref[...] = (d * inv * g + beta).astype(o_ref.dtype)
    # NOTE: rows in a ragged last block may hold garbage; they are masked on
    # store, so any Inf/NaN produced there never reaches the output.


def _ffn_ln_split_kernel(x_ref, w1c_ref, b1c_ref, w1p_ref, b1p_ref,
                         w2c_ref, b2c_ref, w2p_ref, b2p_ref, g_ref, beta_ref,
                         o_ref, *, eps, d_hid, d_content):
    """128-aligned partitions: two real branch matmuls (no zero-padding FLOPs)."""
    x = x_ref[...]
    xb = x.astype(jnp.bfloat16)                    # bf16 operands -> full-rate MXU
    xc = xb[:, :d_content]                         # static, 128-aligned lane slices
    xp = xb[:, d_content:]

    hc = jnp.dot(xc, w1c_ref[...], preferred_element_type=jnp.float32)
    hc = jnp.maximum(hc + b1c_ref[...], 0.0)       # ReLU (relu_dropout = id, eval)
    yc = jnp.dot(hc.astype(jnp.bfloat16), w2c_ref[...],
                 preferred_element_type=jnp.float32) + b2c_ref[...]

    hp = jnp.dot(xp, w1p_ref[...], preferred_element_type=jnp.float32)
    hp = jnp.maximum(hp + b1p_ref[...], 0.0)
    yp = jnp.dot(hp.astype(jnp.bfloat16), w2p_ref[...],
                 preferred_element_type=jnp.float32) + b2p_ref[...]

    y = jnp.concatenate([yc, yp], axis=-1)         # 128-aligned lane concat
    _layernorm_residual(y, x.astype(jnp.float32), g_ref[...], beta_ref[...],
                        o_ref, eps=eps, d_hid=d_hid)


def _ffn_ln_packed_kernel(x_ref, w1_ref, b1_ref, w2_ref, b2_ref, g_ref, beta_ref,
                          o_ref, *, eps, d_hid):
    """Fallback for non-128-aligned partitions: block-diagonal packed weights.

    The zero off-diagonal blocks contribute exactly 0.0 to every f32 accumulator,
    so results equal the two-branch computation.
    """
    x = x_ref[...]
    xb = x.astype(jnp.bfloat16)
    h = jnp.dot(xb, w1_ref[...], preferred_element_type=jnp.float32)
    h = jnp.maximum(h + b1_ref[...], 0.0)
    y = jnp.dot(h.astype(jnp.bfloat16), w2_ref[...],
                preferred_element_type=jnp.float32) + b2_ref[...]
    _layernorm_residual(y, x.astype(jnp.float32), g_ref[...], beta_ref[...],
                        o_ref, eps=eps, d_hid=d_hid)


# ---------------------------------------------------------------------------
# Wrapper
# ---------------------------------------------------------------------------

def prepare_params(params):
    """One-time packing/casting of the module parameters for the kernel.

    Call once at model-load time (not per forward) so weight packing never
    competes with the kernel's input DMA.
    """
    (w1c, b1c, w1p, b1p, w2c, b2c, w2p, b2p, a_2, b_2) = params
    d_content, d_ff2 = w1c.shape
    d_positional = w1p.shape[0]
    d_hid = d_content + d_positional
    d_ff = 2 * d_ff2
    bf16, f32 = jnp.bfloat16, jnp.float32

    g = a_2.astype(f32).reshape(1, d_hid)
    beta = b_2.astype(f32).reshape(1, d_hid)

    aligned = (d_content % 128 == 0 and d_positional % 128 == 0
               and d_ff2 % 128 == 0)
    if aligned:
        # Real parser sizes (1024/512/2048) take this path: half the FLOPs and
        # half the weight bytes of the packed variant.
        arrays = (
            w1c.astype(bf16), b1c.astype(f32).reshape(1, d_ff2),
            w1p.astype(bf16), b1p.astype(f32).reshape(1, d_ff2),
            w2c.astype(bf16), b2c.astype(f32).reshape(1, d_content),
            w2p.astype(bf16), b2p.astype(f32).reshape(1, d_positional),
            g, beta,
        )
        mode = "split"
    else:
        w1 = jnp.zeros((d_hid, d_ff), bf16)
        w1 = w1.at[:d_content, :d_ff2].set(w1c.astype(bf16))
        w1 = w1.at[d_content:, d_ff2:].set(w1p.astype(bf16))
        b1 = jnp.concatenate([b1c, b1p]).astype(f32).reshape(1, d_ff)
        w2 = jnp.zeros((d_ff, d_hid), bf16)
        w2 = w2.at[:d_ff2, :d_content].set(w2c.astype(bf16))
        w2 = w2.at[d_ff2:, d_content:].set(w2p.astype(bf16))
        b2 = jnp.concatenate([b2c, b2p]).astype(f32).reshape(1, d_hid)
        arrays = (w1, b1, w2, b2, g, beta)
        mode = "packed"

    arrays = tuple(jax.block_until_ready(a) for a in arrays)
    return dict(mode=mode, arrays=arrays, d_hid=d_hid, d_content=d_content,
                d_positional=d_positional, d_ff=d_ff, d_ff2=d_ff2)


def partitioned_ffn(x, prepared, *, eps=EPS, max_row_tile=None):
    """Pallas implementation of PartitionedPositionwiseFeedForward.forward (eval)."""
    d_hid = prepared["d_hid"]
    d_ff = prepared["d_ff"]
    assert x.shape[-1] == d_hid

    lead = x.shape[:-1]
    rows = math.prod(lead) if lead else 1
    x2 = x.reshape(rows, d_hid)

    if max_row_tile is None:
        max_row_tile = _default_max_row_tile()
    # Large, sublane-aligned row tile; no wrapper-side pad/copy of the input.
    row_tile = min(max_row_tile, _round_up(rows, 8))
    grid = (pl.cdiv(rows, row_tile),)

    arrays = prepared["arrays"]
    if prepared["mode"] == "split":
        kernel = functools.partial(_ffn_ln_split_kernel, eps=eps, d_hid=d_hid,
                                   d_content=prepared["d_content"])
    else:
        kernel = functools.partial(_ffn_ln_packed_kernel, eps=eps, d_hid=d_hid)

    weight_bytes = sum(int(a.size) * a.dtype.itemsize for a in arrays)
    io_itemsize = jnp.dtype(x.dtype).itemsize
    mm_flops = 4 * rows * d_hid * prepared["d_ff2"]
    if prepared["mode"] == "packed":
        mm_flops *= 2  # packed variant multiplies the zero blocks too
    cost = pl.CostEstimate(
        flops=int(mm_flops),
        transcendentals=int(2 * rows),                       # sqrt + rcp per row
        bytes_accessed=int(2 * rows * d_hid * io_itemsize + weight_bytes),
    )

    def run(weight_buffers):
        if weight_buffers is None:
            def resident(shape):
                return pl.BlockSpec(shape, lambda i: (0,) * len(shape))
            wbuf = 2
        else:
            def resident(shape):
                return pl.BlockSpec(shape, lambda i: (0,) * len(shape),
                                    pipeline_mode=pl.Buffered(weight_buffers))
            wbuf = weight_buffers

        in_specs = [pl.BlockSpec((row_tile, d_hid), lambda i: (i, 0))]
        in_specs += [resident(tuple(a.shape)) for a in arrays]

        # Explicit VMEM budget: resident weights + double-buffered x/out tiles
        # + f32 hidden intermediate / LN temps, with headroom.
        vmem_need = (weight_bytes * wbuf
                     + 4 * row_tile * d_hid * io_itemsize
                     + row_tile * (d_ff + 4 * d_hid) * 4)
        vmem_limit = int(min(max(int(1.25 * vmem_need) + (4 << 20), 16 << 20),
                             64 << 20))

        return pl.pallas_call(
            kernel,
            out_shape=jax.ShapeDtypeStruct((rows, d_hid), x.dtype),
            grid_spec=pltpu.PrefetchScalarGridSpec(
                num_scalar_prefetch=0,
                grid=grid,
                in_specs=in_specs,
                out_specs=pl.BlockSpec((row_tile, d_hid), lambda i: (i, 0)),
            ),
            compiler_params=pltpu.CompilerParams(
                dimension_semantics=("parallel",),   # row grid shards across TCs
                vmem_limit_bytes=vmem_limit,
            ),
            cost_estimate=cost,
        )(x2, *arrays)

    try:
        out = run(weight_buffers=1)     # single-buffered resident weights
    except Exception:
        # Fallback if this jax version rejects pipeline_mode=pl.Buffered(1).
        out = run(weight_buffers=None)

    return out.reshape(*lead, d_hid)


# ---------------------------------------------------------------------------
# References + test harness
# ---------------------------------------------------------------------------

def _reference_f32(x, params, eps=EPS):
    """Pure-JAX mirror of the PyTorch forward (eval mode), full f32 precision."""
    (w1c, b1c, w1p, b1p, w2c, b2c, w2p, b2p, a_2, b_2) = params
    d_content = w1c.shape[0]
    hi = jax.lax.Precision.HIGHEST
    xc, xp = x[..., :d_content], x[..., d_content:]
    oc = jnp.maximum(jnp.dot(xc, w1c, precision=hi) + b1c, 0.0)
    oc = jnp.dot(oc, w2c, precision=hi) + b2c
    op = jnp.maximum(jnp.dot(xp, w1p, precision=hi) + b1p, 0.0)
    op = jnp.dot(op, w2p, precision=hi) + b2p
    y = jnp.concatenate([oc, op], axis=-1) + x
    mu = jnp.mean(y, axis=-1, keepdims=True)
    sigma = jnp.sqrt(jnp.sum((y - mu) ** 2, axis=-1, keepdims=True)
                     / (y.shape[-1] - 1))
    return (y - mu) / (sigma + eps) * a_2 + b_2


def _reference_bf16_ops(x, params, eps=EPS):
    """Reference mirroring the kernel's matmul precision (bf16 operands, f32 acc)."""
    (w1c, b1c, w1p, b1p, w2c, b2c, w2p, b2p, a_2, b_2) = params
    d_content = w1c.shape[0]
    bf = jnp.bfloat16

    def dot_bf(a, b):
        return jnp.dot(a.astype(bf), b.astype(bf),
                       preferred_element_type=jnp.float32)

    xc, xp = x[..., :d_content], x[..., d_content:]
    hc = jnp.maximum(dot_bf(xc, w1c) + b1c, 0.0)
    oc = dot_bf(hc, w2c) + b2c
    hp = jnp.maximum(dot_bf(xp, w1p) + b1p, 0.0)
    op = dot_bf(hp, w2p) + b2p
    y = jnp.concatenate([oc, op], axis=-1) + x
    mu = jnp.mean(y, axis=-1, keepdims=True)
    sigma = jnp.sqrt(jnp.sum((y - mu) ** 2, axis=-1, keepdims=True)
                     / (y.shape[-1] - 1))
    return (y - mu) / (sigma + eps) * a_2 + b_2


def _bf16_grid(a):
    # Snap values to the bf16 grid so the kernel's bf16 MXU operands represent
    # the first-layer inputs exactly.
    return a.astype(jnp.bfloat16).astype(jnp.float32)


def _make_params(key, d_hid, d_positional, d_ff):
    d_content, d_ff2 = d_hid - d_positional, d_ff // 2
    ks = jax.random.split(key, 10)
    w1c = _bf16_grid(0.1 * jax.random.normal(ks[0], (d_content, d_ff2), jnp.float32))
    b1c = _bf16_grid(0.1 * jax.random.normal(ks[1], (d_ff2,), jnp.float32))
    w1p = _bf16_grid(0.1 * jax.random.normal(ks[2], (d_positional, d_ff2), jnp.float32))
    b1p = _bf16_grid(0.1 * jax.random.normal(ks[3], (d_ff2,), jnp.float32))
    w2c = _bf16_grid(0.1 * jax.random.normal(ks[4], (d_ff2, d_content), jnp.float32))
    b2c = _bf16_grid(0.1 * jax.random.normal(ks[5], (d_content,), jnp.float32))
    w2p = _bf16_grid(0.1 * jax.random.normal(ks[6], (d_ff2, d_positional), jnp.float32))
    b2p = _bf16_grid(0.1 * jax.random.normal(ks[7], (d_positional,), jnp.float32))
    # LayerNormalization params (module init is ones/zeros; perturbed so the
    # affine path is actually exercised numerically).
    a_2 = _bf16_grid(1.0 + 0.1 * jax.random.normal(ks[8], (d_hid,), jnp.float32))
    b_2 = _bf16_grid(0.1 * jax.random.normal(ks[9], (d_hid,), jnp.float32))
    return (w1c, b1c, w1p, b1p, w2c, b2c, w2p, b2p, a_2, b_2)


def _run_case(name, key, rows, d_hid, d_positional, d_ff, expect_mode):
    kx, kp = jax.random.split(key)
    x = _bf16_grid(jax.random.normal(kx, (rows, d_hid), jnp.float32))
    params = _make_params(kp, d_hid, d_positional, d_ff)

    prepared = prepare_params(params)
    assert prepared["mode"] == expect_mode, (name, prepared["mode"])

    out = jax.block_until_ready(partitioned_ffn(x, prepared, eps=EPS))
    assert out.shape == x.shape and out.dtype == x.dtype

    # Tight check vs a precision-matched (bf16 matmul operands) reference.
    ref_bf = _reference_bf16_ops(x, params, eps=EPS)
    err_bf = float(jnp.max(jnp.abs(out - ref_bf)))
    assert jnp.allclose(out, ref_bf, atol=2e-3, rtol=2e-3), (
        f"{name}: mismatch vs precision-matched reference, max abs err = {err_bf}")

    # Loose check vs the exact f32 module semantics (bf16 hidden activations
    # introduce a small, documented deviation from Precision.HIGHEST).
    ref_f32 = _reference_f32(x, params, eps=EPS)
    err_f32 = float(jnp.max(jnp.abs(out - ref_f32)))
    assert jnp.allclose(out, ref_f32, atol=2e-2, rtol=2e-2), (
        f"{name}: mismatch vs f32 reference, max abs err = {err_f32}")


if __name__ == "__main__":
    key = jax.random.PRNGKey(0)
    k1, k2 = jax.random.split(key)

    # Small toy sizes (non-128-aligned partition) -> packed block-diagonal path.
    # The parser packs tokens, so x is [num_tokens, d_hid]; batch=2, seq=8.
    _run_case("packed", k1, rows=2 * 8, d_hid=128, d_positional=32, d_ff=256,
              expect_mode="packed")

    # 128-aligned partitions (shape pattern of the real parser) -> split path.
    _run_case("split", k2, rows=2 * 8, d_hid=256, d_positional=128, d_ff=256,
              expect_mode="split")

    print("KERNEL_OK")
</pallas_src>

<mosaic_0001>
module attributes {stable_mosaic.version = 11 : i64} {
  func.func @_ffn_ln_packed_kernel(%arg0: i32, %arg1: memref<16x128xf32, #tpu.memory_space<vmem>>, %arg2: memref<128x256xbf16, #tpu.memory_space<vmem>>, %arg3: memref<1x256xf32, #tpu.memory_space<vmem>>, %arg4: memref<256x128xbf16, #tpu.memory_space<vmem>>, %arg5: memref<1x128xf32, #tpu.memory_space<vmem>>, %arg6: memref<1x128xf32, #tpu.memory_space<vmem>>, %arg7: memref<1x128xf32, #tpu.memory_space<vmem>>, %arg8: memref<16x128xf32, #tpu.memory_space<vmem>>) attributes {dimension_semantics = [#tpu.dimension_semantics<parallel>], iteration_bounds = array<i64: 1>, scalar_prefetch = 0 : i64, scratch_operands = 0 : i64, tpu.core_type = #tpu.core_type<tc>, window_params = [{transform_indices = @transform_0, window_bounds = array<i64: 16, 128>}, {pipeline_mode = #tpu.pipeline_mode<synchronous>, transform_indices = @transform_1, window_bounds = array<i64: 128, 256>}, {pipeline_mode = #tpu.pipeline_mode<synchronous>, transform_indices = @transform_2, window_bounds = array<i64: 1, 256>}, {pipeline_mode = #tpu.pipeline_mode<synchronous>, transform_indices = @transform_3, window_bounds = array<i64: 256, 128>}, {pipeline_mode = #tpu.pipeline_mode<synchronous>, transform_indices = @transform_4, window_bounds = array<i64: 1, 128>}, {pipeline_mode = #tpu.pipeline_mode<synchronous>, transform_indices = @transform_5, window_bounds = array<i64: 1, 128>}, {pipeline_mode = #tpu.pipeline_mode<synchronous>, transform_indices = @transform_6, window_bounds = array<i64: 1, 128>}, {transform_indices = @transform_7, window_bounds = array<i64: 16, 128>}]} {
    %c0 = arith.constant 0 : index
    %c0_0 = arith.constant 0 : index
    %0 = vector.load %arg1[%c0, %c0_0] : memref<16x128xf32, #tpu.memory_space<vmem>>, vector<16x128xf32>
    %1 = arith.truncf %0 : vector<16x128xf32> to vector<16x128xbf16>
    %c0_1 = arith.constant 0 : index
    %c0_2 = arith.constant 0 : index
    %2 = vector.load %arg2[%c0_1, %c0_2] : memref<128x256xbf16, #tpu.memory_space<vmem>>, vector<128x256xbf16>
    %cst = arith.constant dense<0.000000e+00> : vector<16x256xf32>
    %3 = tpu.matmul %1, %2, %cst {dimension_numbers = #tpu.dot_dimension_numbers<[1], [0], [0], [1], [0, 0, 1, 1], [], []>} : vector<16x128xbf16>, vector<128x256xbf16>, vector<16x256xf32> -> vector<16x256xf32>
    %c0_3 = arith.constant 0 : index
    %c0_4 = arith.constant 0 : index
    %4 = vector.load %arg3[%c0_3, %c0_4] : memref<1x256xf32, #tpu.memory_space<vmem>>, vector<1x256xf32>
    %5 = vector.broadcast %4 : vector<1x256xf32> to vector<16x256xf32>
    %6 = arith.addf %3, %5 : vector<16x256xf32>
    %cst_5 = arith.constant 0.000000e+00 : f32
    %7 = vector.broadcast %cst_5 : f32 to vector<16x256xf32>
    %8 = arith.maximumf %6, %7 : vector<16x256xf32>
    %9 = arith.truncf %8 : vector<16x256xf32> to vector<16x256xbf16>
    %c0_6 = arith.constant 0 : index
    %c0_7 = arith.constant 0 : index
    %10 = vector.load %arg4[%c0_6, %c0_7] : memref<256x128xbf16, #tpu.memory_space<vmem>>, vector<256x128xbf16>
    %cst_8 = arith.constant dense<0.000000e+00> : vector<16x128xf32>
    %11 = tpu.matmul %9, %10, %cst_8 {dimension_numbers = #tpu.dot_dimension_numbers<[1], [0], [0], [1], [0, 0, 1, 1], [], []>} : vector<16x256xbf16>, vector<256x128xbf16>, vector<16x128xf32> -> vector<16x128xf32>
    %c0_9 = arith.constant 0 : index
    %c0_10 = arith.constant 0 : index
    %12 = vector.load %arg5[%c0_9, %c0_10] : memref<1x128xf32, #tpu.memory_space<vmem>>, vector<1x128xf32>
    %13 = vector.broadcast %12 : vector<1x128xf32> to vector<16x128xf32>
    %14 = arith.addf %11, %13 : vector<16x128xf32>
    %c0_11 = arith.constant 0 : index
    %c0_12 = arith.constant 0 : index
    %15 = vector.load %arg6[%c0_11, %c0_12] : memref<1x128xf32, #tpu.memory_space<vmem>>, vector<1x128xf32>
    %c0_13 = arith.constant 0 : index
    %c0_14 = arith.constant 0 : index
    %16 = vector.load %arg7[%c0_13, %c0_14] : memref<1x128xf32, #tpu.memory_space<vmem>>, vector<1x128xf32>
    %17 = arith.addf %14, %0 : vector<16x128xf32>
    %cst_15 = arith.constant dense<0.000000e+00> : vector<16xf32>
    %18 = vector.multi_reduction <add>, %17, %cst_15 [1] : vector<16x128xf32> to vector<16xf32>
    %19 = vector.shape_cast %18 : vector<16xf32> to vector<16x1xf32>
    %cst_16 = arith.constant 7.812500e-03 : f32
    %20 = vector.broadcast %cst_16 : f32 to vector<16x1xf32>
    %21 = arith.mulf %19, %20 : vector<16x1xf32>
    %22 = vector.broadcast %21 : vector<16x1xf32> to vector<16x128xf32>
    %23 = arith.subf %17, %22 : vector<16x128xf32>
    %24 = arith.mulf %23, %23 : vector<16x128xf32>
    %cst_17 = arith.constant dense<0.000000e+00> : vector<16xf32>
    %25 = vector.multi_reduction <add>, %24, %cst_17 [1] : vector<16x128xf32> to vector<16xf32>
    %26 = vector.shape_cast %25 : vector<16xf32> to vector<16x1xf32>
    %cst_18 = arith.constant 0.00787401571 : f32
    %27 = vector.broadcast %cst_18 : f32 to vector<16x1xf32>
    %28 = arith.mulf %26, %27 : vector<16x1xf32>
    %29 = math.sqrt %28 : vector<16x1xf32>
    %cst_19 = arith.constant 1.000000e-03 : f32
    %30 = vector.broadcast %cst_19 : f32 to vector<16x1xf32>
    %31 = arith.addf %29, %30 : vector<16x1xf32>
    %32 = tpu.reciprocal %31 {approx = true} : vector<16x1xf32> -> vector<16x1xf32>
    %33 = arith.mulf %31, %32 : vector<16x1xf32>
    %cst_20 = arith.constant 2.000000e+00 : f32
    %34 = vector.broadcast %cst_20 : f32 to vector<16x1xf32>
    %35 = arith.subf %34, %33 : vector<16x1xf32>
    %36 = arith.mulf %32, %35 : vector<16x1xf32>
    %37 = vector.broadcast %36 : vector<16x1xf32> to vector<16x128xf32>
    %38 = arith.mulf %23, %37 : vector<16x128xf32>
    %39 = vector.broadcast %15 : vector<1x128xf32> to vector<16x128xf32>
    %40 = arith.mulf %38, %39 : vector<16x128xf32>
    %41 = vector.broadcast %16 : vector<1x128xf32> to vector<16x128xf32>
    %42 = arith.addf %40, %41 : vector<16x128xf32>
    %c0_21 = arith.constant 0 : index
    %c0_22 = arith.constant 0 : index
    %43 = vector.load %arg8[%c0_21, %c0_22] : memref<16x128xf32, #tpu.memory_space<vmem>>, vector<16x128xf32>
    tpu.vector_store %arg8[%c0_21, %c0_22], %42 {strides = array<i32>} : memref<16x128xf32, #tpu.memory_space<vmem>>, vector<16x128xf32>,
    return
  }
  func.func @transform_0(%arg0: i32) -> (i32, i32) {
    %c0_i32 = arith.constant 0 : i32
    %c0_i32_0 = arith.constant 0 : i32
    return %arg0, %c0_i32 : i32, i32
  }
  func.func @transform_1(%arg0: i32) -> (i32, i32) {
    %c0_i32 = arith.constant 0 : i32
    %c0_i32_0 = arith.constant 0 : i32
    %c0_i32_1 = arith.constant 0 : i32
    return %c0_i32, %c0_i32_0 : i32, i32
  }
  func.func @transform_2(%arg0: i32) -> (i32, i32) {
    %c0_i32 = arith.constant 0 : i32
    %c0_i32_0 = arith.constant 0 : i32
    %c0_i32_1 = arith.constant 0 : i32
    return %c0_i32, %c0_i32_0 : i32, i32
  }
  func.func @transform_3(%arg0: i32) -> (i32, i32) {
    %c0_i32 = arith.constant 0 : i32
    %c0_i32_0 = arith.constant 0 : i32
    %c0_i32_1 = arith.constant 0 : i32
    return %c0_i32, %c0_i32_0 : i32, i32
  }
  func.func @transform_4(%arg0: i32) -> (i32, i32) {
    %c0_i32 = arith.constant 0 : i32
    %c0_i32_0 = arith.constant 0 : i32
    %c0_i32_1 = arith.constant 0 : i32
    return %c0_i32, %c0_i32_0 : i32, i32
  }
  func.func @transform_5(%arg0: i32) -> (i32, i32) {
    %c0_i32 = arith.constant 0 : i32
    %c0_i32_0 = arith.constant 0 : i32
    %c0_i32_1 = arith.constant 0 : i32
    return %c0_i32, %c0_i32_0 : i32, i32
  }
  func.func @transform_6(%arg0: i32) -> (i32, i32) {
    %c0_i32 = arith.constant 0 : i32
    %c0_i32_0 = arith.constant 0 : i32
    %c0_i32_1 = arith.constant 0 : i32
    return %c0_i32, %c0_i32_0 : i32, i32
  }
  func.func @transform_7(%arg0: i32) -> (i32, i32) {
    %c0_i32 = arith.constant 0 : i32
    %c0_i32_0 = arith.constant 0 : i32
    return %arg0, %c0_i32 : i32, i32
  }
}

module attributes {stable_mosaic.version = 11 : i64} {
  func.func @_ffn_ln_packed_kernel(%arg0: i32, %arg1: memref<16x128xf32, #tpu.memory_space<vmem>>, %arg2: memref<128x256xbf16, #tpu.memory_space<vmem>>, %arg3: memref<1x256xf32, #tpu.memory_space<vmem>>, %arg4: memref<256x128xbf16, #tpu.memory_space<vmem>>, %arg5: memref<1x128xf32, #tpu.memory_space<vmem>>, %arg6: memref<1x128xf32, #tpu.memory_space<vmem>>, %arg7: memref<1x128xf32, #tpu.memory_space<vmem>>, %arg8: memref<16x128xf32, #tpu.memory_space<vmem>>) attributes {dimension_semantics = [#tpu.dimension_semantics<parallel>], iteration_bounds = array<i64: 1>, scalar_prefetch = 0 : i64, scratch_operands = 0 : i64, tpu.core_type = #tpu.core_type<tc>, window_params = [{transform_indices = @transform_0, window_bounds = array<i64: 16, 128>}, {pipeline_mode = #tpu.pipeline_mode<synchronous>, transform_indices = @transform_1, window_bounds = array<i64: 128, 256>}, {pipeline_mode = #tpu.pipeline_mode<synchronous>, transform_indices = @transform_2, window_bounds = array<i64: 1, 256>}, {pipeline_mode = #tpu.pipeline_mode<synchronous>, transform_indices = @transform_3, window_bounds = array<i64: 256, 128>}, {pipeline_mode = #tpu.pipeline_mode<synchronous>, transform_indices = @transform_4, window_bounds = array<i64: 1, 128>}, {pipeline_mode = #tpu.pipeline_mode<synchronous>, transform_indices = @transform_5, window_bounds = array<i64: 1, 128>}, {pipeline_mode = #tpu.pipeline_mode<synchronous>, transform_indices = @transform_6, window_bounds = array<i64: 1, 128>}, {transform_indices = @transform_7, window_bounds = array<i64: 16, 128>}]} {
    %c0 = arith.constant 0 : index
    %c0_0 = arith.constant 0 : index
    %0 = vector.load %arg1[%c0, %c0_0] : memref<16x128xf32, #tpu.memory_space<vmem>>, vector<16x128xf32>
    %1 = arith.truncf %0 : vector<16x128xf32> to vector<16x128xbf16>
    %c0_1 = arith.constant 0 : index
    %c0_2 = arith.constant 0 : index
    %2 = vector.load %arg2[%c0_1, %c0_2] : memref<128x256xbf16, #tpu.memory_space<vmem>>, vector<128x256xbf16>
    %cst = arith.constant dense<0.000000e+00> : vector<16x256xf32>
    %3 = tpu.matmul %1, %2, %cst {dimension_numbers = #tpu.dot_dimension_numbers<[1], [0], [0], [1], [0, 0, 1, 1], [], []>} : vector<16x128xbf16>, vector<128x256xbf16>, vector<16x256xf32> -> vector<16x256xf32>
    %c0_3 = arith.constant 0 : index
    %c0_4 = arith.constant 0 : index
    %4 = vector.load %arg3[%c0_3, %c0_4] : memref<1x256xf32, #tpu.memory_space<vmem>>, vector<1x256xf32>
    %5 = vector.broadcast %4 : vector<1x256xf32> to vector<16x256xf32>
    %6 = arith.addf %3, %5 : vector<16x256xf32>
    %cst_5 = arith.constant 0.000000e+00 : f32
    %7 = vector.broadcast %cst_5 : f32 to vector<16x256xf32>
    %8 = arith.maximumf %6, %7 : vector<16x256xf32>
    %9 = arith.truncf %8 : vector<16x256xf32> to vector<16x256xbf16>
    %c0_6 = arith.constant 0 : index
    %c0_7 = arith.constant 0 : index
    %10 = vector.load %arg4[%c0_6, %c0_7] : memref<256x128xbf16, #tpu.memory_space<vmem>>, vector<256x128xbf16>
    %cst_8 = arith.constant dense<0.000000e+00> : vector<16x128xf32>
    %11 = tpu.matmul %9, %10, %cst_8 {dimension_numbers = #tpu.dot_dimension_numbers<[1], [0], [0], [1], [0, 0, 1, 1], [], []>} : vector<16x256xbf16>, vector<256x128xbf16>, vector<16x128xf32> -> vector<16x128xf32>
    %c0_9 = arith.constant 0 : index
    %c0_10 = arith.constant 0 : index
    %12 = vector.load %arg5[%c0_9, %c0_10] : memref<1x128xf32, #tpu.memory_space<vmem>>, vector<1x128xf32>
    %13 = vector.broadcast %12 : vector<1x128xf32> to vector<16x128xf32>
    %14 = arith.addf %11, %13 : vector<16x128xf32>
    %c0_11 = arith.constant 0 : index
    %c0_12 = arith.constant 0 : index
    %15 = vector.load %arg6[%c0_11, %c0_12] : memref<1x128xf32, #tpu.memory_space<vmem>>, vector<1x128xf32>
    %c0_13 = arith.constant 0 : index
    %c0_14 = arith.constant 0 : index
    %16 = vector.load %arg7[%c0_13, %c0_14] : memref<1x128xf32, #tpu.memory_space<vmem>>, vector<1x128xf32>
    %17 = arith.addf %14, %0 : vector<16x128xf32>
    %cst_15 = arith.constant dense<0.000000e+00> : vector<16xf32>
    %18 = vector.multi_reduction <add>, %17, %cst_15 [1] : vector<16x128xf32> to vector<16xf32>
    %19 = vector.shape_cast %18 : vector<16xf32> to vector<16x1xf32>
    %cst_16 = arith.constant 7.812500e-03 : f32
    %20 = vector.broadcast %cst_16 : f32 to vector<16x1xf32>
    %21 = arith.mulf %19, %20 : vector<16x1xf32>
    %22 = vector.broadcast %21 : vector<16x1xf32> to vector<16x128xf32>
    %23 = arith.subf %17, %22 : vector<16x128xf32>
    %24 = arith.mulf %23, %23 : vector<16x128xf32>
    %cst_17 = arith.constant dense<0.000000e+00> : vector<16xf32>
    %25 = vector.multi_reduction <add>, %24, %cst_17 [1] : vector<16x128xf32> to vector<16xf32>
    %26 = vector.shape_cast %25 : vector<16xf32> to vector<16x1xf32>
    %cst_18 = arith.constant 0.00787401571 : f32
    %27 = vector.broadcast %cst_18 : f32 to vector<16x1xf32>
    %28 = arith.mulf %26, %27 : vector<16x1xf32>
    %29 = math.sqrt %28 : vector<16x1xf32>
    %cst_19 = arith.constant 1.000000e-03 : f32
    %30 = vector.broadcast %cst_19 : f32 to vector<16x1xf32>
    %31 = arith.addf %29, %30 : vector<16x1xf32>
    %32 = tpu.reciprocal %31 {approx = true} : vector<16x1xf32> -> vector<16x1xf32>
    %33 = arith.mulf %31, %32 : vector<16x1xf32>
    %cst_20 = arith.constant 2.000000e+00 : f32
    %34 = vector.broadcast %cst_20 : f32 to vector<16x1xf32>
    %35 = arith.subf %34, %33 : vector<16x1xf32>
    %36 = arith.mulf %32, %35 : vector<16x1xf32>
    %37 = vector.broadcast %36 : vector<16x1xf32> to vector<16x128xf32>
    %38 = arith.mulf %23, %37 : vector<16x128xf32>
    %39 = vector.broadcast %15 : vector<1x128xf32> to vector<16x128xf32>
    %40 = arith.mulf %38, %39 : vector<16x128xf32>
    %41 = vector.broadcast %16 : vector<1x128xf32> to vector<16x128xf32>
    %42 = arith.addf %40, %41 : vector<16x128xf32>
    %c0_21 = arith.constant 0 : index
    %c0_22 = arith.constant 0 : index
    %43 = vector.load %arg8[%c0_21, %c0_22] : memref<16x128xf32, #tpu.memory_space<vmem>>, vector<16x128xf32>
    tpu.vector_store %arg8[%c0_21, %c0_22], %42 {strides = array<i32>} : memref<16x128xf32, #tpu.memory_space<vmem>>, vector<16x128xf32>,
    return
  }
  func.func @transform_0(%arg0: i32) -> (i32, i32) {
    %c0_i32 = arith.constant 0 : i32
    %c0_i32_0 = arith.constant 0 : i32
    return %arg0, %c0_i32 : i32, i32
  }
  func.func @transform_1(%arg0: i32) -> (i32, i32) {
    %c0_i32 = arith.constant 0 : i32
    %c0_i32_0 = arith.constant 0 : i32
    %c0_i32_1 = arith.constant 0 : i32
    return %c0_i32, %c0_i32_0 : i32, i32
  }
  func.func @transform_2(%arg0: i32) -> (i32, i32) {
    %c0_i32 = arith.constant 0 : i32
    %c0_i32_0 = arith.constant 0 : i32
    %c0_i32_1 = arith.constant 0 : i32
    return %c0_i32, %c0_i32_0 : i32, i32
  }
  func.func @transform_3(%arg0: i32) -> (i32, i32) {
    %c0_i32 = arith.constant 0 : i32
    %c0_i32_0 = arith.constant 0 : i32
    %c0_i32_1 = arith.constant 0 : i32
    return %c0_i32, %c0_i32_0 : i32, i32
  }
  func.func @transform_4(%arg0: i32) -> (i32, i32) {
    %c0_i32 = arith.constant 0 : i32
    %c0_i32_0 = arith.constant 0 : i32
    %c0_i32_1 = arith.constant 0 : i32
    return %c0_i32, %c0_i32_0 : i32, i32
  }
  func.func @transform_5(%arg0: i32) -> (i32, i32) {
    %c0_i32 = arith.constant 0 : i32
    %c0_i32_0 = arith.constant 0 : i32
    %c0_i32_1 = arith.constant 0 : i32
    return %c0_i32, %c0_i32_0 : i32, i32
  }
  func.func @transform_6(%arg0: i32) -> (i32, i32) {
    %c0_i32 = arith.constant 0 : i32
    %c0_i32_0 = arith.constant 0 : i32
    %c0_i32_1 = arith.constant 0 : i32
    return %c0_i32, %c0_i32_0 : i32, i32
  }
  func.func @transform_7(%arg0: i32) -> (i32, i32) {
    %c0_i32 = arith.constant 0 : i32
    %c0_i32_0 = arith.constant 0 : i32
    return %arg0, %c0_i32 : i32, i32
  }
}

</mosaic_0001>

<llo_original>
// kernel: tpu_custom_call.1
$region0: #{tpu_custom_call.1}
  #allocation0 [shape = 'u32[]', space=smem, size = 0x4, offset = 0x4, fixed_abs, tag = 'smem constant byte address 0x4 - core index']
  #allocation1 [shape = 'u32[144,128]{1,0:T(1,128)}', space=vmem, size = 0x12000, scoped, tag = 'internal scratch']
  %s0 = inlined_call_operand.hbm [shape: f32[16,128], index: 0, kind: input, shape index: {}]
  %s1 = inlined_call_operand.hbm [shape: bf16[128,256], index: 1, kind: input, shape index: {}]
  %s2 = inlined_call_operand.vmem [shape: f32[1,256], index: 2, kind: input, shape index: {}]
  %s3 = inlined_call_operand.hbm [shape: bf16[256,128], index: 3, kind: input, shape index: {}]
  %s4 = inlined_call_operand.vmem [shape: f32[1,128], index: 4, kind: input, shape index: {}]
  %s5 = inlined_call_operand.vmem [shape: f32[1,128], index: 5, kind: input, shape index: {}]
  %s6 = inlined_call_operand.vmem [shape: f32[1,128], index: 6, kind: input, shape index: {}]
  %s7 = inlined_call_operand.hbm [shape: f32[16,128], index: 7, kind: output, shape index: {}]
  %s8 = sld [smem:[#allocation0]]
  $region50: #{tpu_custom_call.1} parent=0
    _
  %s10 = ssub.s32 1, %s8
  %s11 = scalar_select 0, %s10, %s8
  $region1: #{tpu_custom_call.1} parent=0
    #allocation2 [shape = 'u8[8192]{0}', space=vmem, size = 0x2000, scoped, tag = 'input window, operand 0, single buffered']
    #allocation3 [shape = 's32[1]{0}', space=sflag, size = 0x4, scoped, tag = 'scoped memory for tpu_custom_call.1']
    #allocation4 [shape = 's32[1]{0}', space=sflag, size = 0x4, scoped, tag = 'scoped memory for tpu_custom_call.1']
    #allocation5 [shape = 'u8[65536]{0}', space=vmem, size = 0x10000, scoped, tag = 'input window, operand 1, single buffered']
    #allocation6 [shape = 's32[1]{0}', space=sflag, size = 0x4, scoped, tag = 'scoped memory for tpu_custom_call.1']
    #allocation7 [shape = 'u8[65536]{0}', space=vmem, size = 0x10000, scoped, tag = 'input window, operand 3, single buffered']
    #allocation8 [shape = 'u8[8192]{0}', space=vmem, size = 0x2000, scoped, tag = 'output window, operand 0, single buffered']
    %12 = vsyncpa [#allocation3], 0
    %13 = vsyncpa [#allocation6], 0
    %14 = vsyncpa [#allocation4], 0
    // Predicated region
    $region2: #{tpu_custom_call.1} parent=1 // pred_check
      _
    $region3: #{tpu_custom_call.1} parent=1 // pred_check_branch
      %16 = sbr.rel (0) target = $region5
    $region4: #{tpu_custom_call.1} parent=1 // pred_region
      %s18 = ssub.s32 256, 256
      %19 = vsyncadd [#allocation3], %s18
      %s20 = sshll.u32 [#allocation2], 4
      %s21 = int_to_ptr.vmem [resolvable:$true] %s20
      %26 = dma.hbm_to_vmem [thread:$0]  %s0, 256, %s21, [#allocation3], 128, 128, 8
    $region5: #{tpu_custom_call.1} parent=1 // pred_fallthru
      _
    // Predicated region
    $region6: #{tpu_custom_call.1} parent=1 // pred_check
      _
    $region7: #{tpu_custom_call.1} parent=1 // pred_check_branch
      %28 = sbr.rel (0) target = $region9
    $region8: #{tpu_custom_call.1} parent=1 // pred_region
      %s30 = ssub.s32 2048, 2048
      %31 = vsyncadd [#allocation6], %s30
      %s32 = sshll.u32 [#allocation5], 4
      %s33 = int_to_ptr.vmem [resolvable:$true] %s32
      %38 = dma.hbm_to_vmem [thread:$0]  %s1, 2048, %s33, [#allocation6], 128, 128, 8
    $region9: #{tpu_custom_call.1} parent=1 // pred_fallthru
      _
    // Predicated region
    $region10: #{tpu_custom_call.1} parent=1 // pred_check
      _
    $region11: #{tpu_custom_call.1} parent=1 // pred_check_branch
      %40 = sbr.rel (0) target = $region13
    $region12: #{tpu_custom_call.1} parent=1 // pred_region
      _
    $region13: #{tpu_custom_call.1} parent=1 // pred_fallthru
      _
    // Predicated region
    $region14: #{tpu_custom_call.1} parent=1 // pred_check
      _
    $region15: #{tpu_custom_call.1} parent=1 // pred_check_branch
      %42 = sbr.rel (0) target = $region17
    $region16: #{tpu_custom_call.1} parent=1 // pred_region
      %s44 = ssub.s32 2048, 2048
      %45 = vsyncadd [#allocation6], %s44
      %s46 = sshll.u32 [#allocation7], 4
      %s47 = int_to_ptr.vmem [resolvable:$true] %s46
      %52 = dma.hbm_to_vmem [thread:$0]  %s3, 2048, %s47, [#allocation6], 64, 64, 4
    $region17: #{tpu_custom_call.1} parent=1 // pred_fallthru
      _
    // Predicated region
    $region18: #{tpu_custom_call.1} parent=1 // pred_check
      _
    $region19: #{tpu_custom_call.1} parent=1 // pred_check_branch
      %54 = sbr.rel (0) target = $region21
    $region20: #{tpu_custom_call.1} parent=1 // pred_region
      _
    $region21: #{tpu_custom_call.1} parent=1 // pred_fallthru
      _
    // Predicated region
    $region22: #{tpu_custom_call.1} parent=1 // pred_check
      _
    $region23: #{tpu_custom_call.1} parent=1 // pred_check_branch
      %56 = sbr.rel (0) target = $region25
    $region24: #{tpu_custom_call.1} parent=1 // pred_region
      _
    $region25: #{tpu_custom_call.1} parent=1 // pred_fallthru
      _
    // Predicated region
    $region26: #{tpu_custom_call.1} parent=1 // pred_check
      _
    $region27: #{tpu_custom_call.1} parent=1 // pred_check_branch
      %58 = sbr.rel (0) target = $region29
    $region28: #{tpu_custom_call.1} parent=1 // pred_region
      _
    $region29: #{tpu_custom_call.1} parent=1 // pred_fallthru
      _
    // Predicated region
    $region30: #{tpu_custom_call.1} parent=1 // pred_check
      _
    $region31: #{tpu_custom_call.1} parent=1 // pred_check_branch
      %60 = sbr.rel (0) target = $region33
    $region32: #{tpu_custom_call.1} parent=1 // pred_region
      %61 = dma.done [#allocation3], 256
    $region33: #{tpu_custom_call.1} parent=1 // pred_fallthru
      _
    // Predicated region
    $region34: #{tpu_custom_call.1} parent=1 // pred_check
      _
    $region35: #{tpu_custom_call.1} parent=1 // pred_check_branch
      %63 = sbr.rel (0) target = $region37
    $region36: #{tpu_custom_call.1} parent=1 // pred_region
      %64 = dma.done [#allocation6], 2048
    $region37: #{tpu_custom_call.1} parent=1 // pred_fallthru
      _
    // Predicated region
    $region38: #{tpu_custom_call.1} parent=1 // pred_check
      _
    $region39: #{tpu_custom_call.1} parent=1 // pred_check_branch
      %66 = sbr.rel (0) target = $region41
    $region40: #{tpu_custom_call.1} parent=1 // pred_region
      %67 = dma.done [#allocation6], 2048
    $region41: #{tpu_custom_call.1} parent=1 // pred_fallthru
      _
    %v69 = vld [vmem:[#allocation2] sm:$0xff]
    %v70 = vld [vmem:[#allocation2 + $0x8] sm:$0xff]
    %v71 = vpack.c.bf16 %v70, %v69
    %v72 = vld [vmem:[#allocation5] sm:$0xff]
    %v73 = vld [vmem:[#allocation5 + $0x8] sm:$0xff]
    %v74 = vld [vmem:[#allocation5 + $0x10] sm:$0xff]
    %v75 = vld [vmem:[#allocation5 + $0x18] sm:$0xff]
    %v76 = vld [vmem:[#allocation5 + $0x20] sm:$0xff]
    %v77 = vld [vmem:[#allocation5 + $0x28] sm:$0xff]
    %v78 = vld [vmem:[#allocation5 + $0x30] sm:$0xff]
    %v79 = vld [vmem:[#allocation5 + $0x38] sm:$0xff]
    %v80 = vld [vmem:[#allocation5 + $0x40] sm:$0xff]
    %v81 = vld [vmem:[#allocation5 + $0x48] sm:$0xff]
    %v82 = vld [vmem:[#allocation5 + $0x50] sm:$0xff]
    %v83 = vld [vmem:[#allocation5 + $0x58] sm:$0xff]
    %v84 = vld [vmem:[#allocation5 + $0x60] sm:$0xff]
    %v85 = vld [vmem:[#allocation5 + $0x68] sm:$0xff]
    %v86 = vld [vmem:[#allocation5 + $0x70] sm:$0xff]
    %v87 = vld [vmem:[#allocation5 + $0x78] sm:$0xff]
    %v88 = vld [vmem:[%s2] sm:$0x3]
    %v90 = vlaneseq
    %v91 = vshrl.u32 %v90, 7
    %v92 = vsub.s32 0, %v91
    %v93 = vrot.slane %v88, %v92
    %v94 = vlaneseq
    %v95 = vshrl.u32 %v94, 7
    %v96 = vsub.s32 1, %v95
    %v97 = vrot.slane %v88, %v96
    %v116 = vunpack.c.l.b16 %v72
    %v117 = vunpack.c.h.b16 %v72
    %v118 = vunpack.c.l.b16 %v73
    %v119 = vunpack.c.h.b16 %v73
    %v120 = vunpack.c.l.b16 %v74
    %v121 = vunpack.c.h.b16 %v74
    %v122 = vunpack.c.l.b16 %v75
    %v123 = vunpack.c.h.b16 %v75
    %v124 = vunpack.c.l.b16 %v76
    %v125 = vunpack.c.h.b16 %v76
    %v126 = vunpack.c.l.b16 %v77
    %v127 = vunpack.c.h.b16 %v77
    %v128 = vunpack.c.l.b16 %v78
    %v129 = vunpack.c.h.b16 %v78
    %v130 = vunpack.c.l.b16 %v79
    %v131 = vunpack.c.h.b16 %v79
    %v132 = vunpack.c.l.b16 %v80
    %v133 = vunpack.c.h.b16 %v80
    %v134 = vunpack.c.l.b16 %v81
    %v135 = vunpack.c.h.b16 %v81
    %v136 = vunpack.c.l.b16 %v82
    %v137 = vunpack.c.h.b16 %v82
    %v138 = vunpack.c.l.b16 %v83
    %v139 = vunpack.c.h.b16 %v83
    %v140 = vunpack.c.l.b16 %v84
    %v141 = vunpack.c.h.b16 %v84
    %v142 = vunpack.c.l.b16 %v85
    %v143 = vunpack.c.h.b16 %v85
    %v144 = vunpack.c.l.b16 %v86
    %v145 = vunpack.c.h.b16 %v86
    %v146 = vunpack.c.l.b16 %v87
    %v147 = vunpack.c.h.b16 %v87
    %v148 = vpack.c.b16 %v118, %v116
    %v149 = vpack.c.b16 %v119, %v117
    %v150 = vpack.c.b16 %v122, %v120
    %v151 = vpack.c.b16 %v123, %v121
    %v152 = vpack.c.b16 %v126, %v124
    %v153 = vpack.c.b16 %v127, %v125
    %v154 = vpack.c.b16 %v130, %v128
    %v155 = vpack.c.b16 %v131, %v129
    %v156 = vpack.c.b16 %v134, %v132
    %v157 = vpack.c.b16 %v135, %v133
    %v158 = vpack.c.b16 %v138, %v136
    %v159 = vpack.c.b16 %v139, %v137
    %v160 = vpack.c.b16 %v142, %v140
    %v161 = vpack.c.b16 %v143, %v141
    %v162 = vpack.c.b16 %v146, %v144
    %v163 = vpack.c.b16 %v147, %v145
    %180 = vmatprep.subr.bf16.mxu0 %v149
    %181 = vmatpush1.bf16.msra.mxu0 %v148
    %182 = vmatprep.subr.bf16.mxu0 %v151
    %183 = vmatpush1.bf16.msra.mxu0 %v150
    %184 = vmatprep.subr.bf16.mxu0 %v153
    %185 = vmatpush1.bf16.msra.mxu0 %v152
    %186 = vmatprep.subr.bf16.mxu0 %v155
    %187 = vmatpush1.bf16.msra.mxu0 %v154
    %188 = vmatprep.subr.bf16.mxu0 %v157
    %189 = vmatpush1.bf16.msra.mxu0 %v156
    %190 = vmatprep.subr.bf16.mxu0 %v159
    %191 = vmatpush1.bf16.msra.mxu0 %v158
    %192 = vmatprep.subr.bf16.mxu0 %v161
    %193 = vmatpush1.bf16.msra.mxu0 %v160
    %194 = vmatprep.subr.bf16.mxu0 %v163
    %195 = vmatpush1.bf16.msra.mxu0 %v162
    %196 = vmatprep.subr.bf16.mxu0 0
    %197 = vmatpush1.bf16.msra.mxu0 0
    %198 = vmatprep.subr.bf16.mxu0 0
    %199 = vmatpush1.bf16.msra.mxu0 0
    %200 = vmatprep.subr.bf16.mxu0 0
    %201 = vmatpush1.bf16.msra.mxu0 0
    %202 = vmatprep.subr.bf16.mxu0 0
    %203 = vmatpush1.bf16.msra.mxu0 0
    %204 = vmatprep.subr.bf16.mxu0 0
    %205 = vmatpush1.bf16.msra.mxu0 0
    %206 = vmatprep.subr.bf16.mxu0 0
    %207 = vmatpush1.bf16.msra.mxu0 0
    %208 = vmatprep.subr.bf16.mxu0 0
    %209 = vmatpush1.bf16.msra.mxu0 0
    %210 = vmatprep.subr.bf16.mxu0 0
    %211 = vmatpush1.bf16.msra.mxu0 0
    %212 = vmatprep.mubr.bf16.mxu0 0
    %213 = vmatmul.mubr.bf16.gmra.mrb[0].mxu0 %v71
    %v214 = vpop.f32.mrb[0].mxu0
    %v215 = vadd.f32 %v93, %v214
    %v216 = vpop.f32.mrb[0].mxu0
    %v217 = vadd.f32 %v97, %v216
    %v218 = vpop.f32.mrb[0].mxu0
    %v219 = vadd.f32 %v93, %v218
    %v220 = vpop.f32.mrb[0].mxu0
    %v221 = vadd.f32 %v97, %v220
    %222 = vdwg.mxu0
    %v223 = vmax.f32 %v215, 0.0
    %v224 = vmax.f32 %v217, 0.0
    %v225 = vmax.f32 %v219, 0.0
    %v226 = vmax.f32 %v221, 0.0
    %v227 = vpack.c.bf16 %v225, %v223
    %v228 = vpack.c.bf16 %v226, %v224
    %v229 = vld [vmem:[#allocation7] sm:$0xf]
    %v230 = vld [vmem:[#allocation7 + $0x4] sm:$0xf]
    %v231 = vld [vmem:[#allocation7 + $0x8] sm:$0xf]
    %v232 = vld [vmem:[#allocation7 + $0xc] sm:$0xf]
    %v233 = vld [vmem:[#allocation7 + $0x10] sm:$0xf]
    %v234 = vld [vmem:[#allocation7 + $0x14] sm:$0xf]
    %v235 = vld [vmem:[#allocation7 + $0x18] sm:$0xf]
    %v236 = vld [vmem:[#allocation7 + $0x1c] sm:$0xf]
    %v237 = vld [vmem:[#allocation7 + $0x20] sm:$0xf]
    %v238 = vld [vmem:[#allocation7 + $0x24] sm:$0xf]
    %v239 = vld [vmem:[#allocation7 + $0x28] sm:$0xf]
    %v240 = vld [vmem:[#allocation7 + $0x2c] sm:$0xf]
    %v241 = vld [vmem:[#allocation7 + $0x30] sm:$0xf]
    %v242 = vld [vmem:[#allocation7 + $0x34] sm:$0xf]
    %v243 = vld [vmem:[#allocation7 + $0x38] sm:$0xf]
    %v244 = vld [vmem:[#allocation7 + $0x3c] sm:$0xf]
    %v245 = vld [vmem:[#allocation7 + $0x40] sm:$0xf]
    %v246 = vld [vmem:[#allocation7 + $0x44] sm:$0xf]
    %v247 = vld [vmem:[#allocation7 + $0x48] sm:$0xf]
    %v248 = vld [vmem:[#allocation7 + $0x4c] sm:$0xf]
    %v249 = vld [vmem:[#allocation7 + $0x50] sm:$0xf]
    %v250 = vld [vmem:[#allocation7 + $0x54] sm:$0xf]
    %v251 = vld [vmem:[#allocation7 + $0x58] sm:$0xf]
    %v252 = vld [vmem:[#allocation7 + $0x5c] sm:$0xf]
    %v253 = vld [vmem:[#allocation7 + $0x60] sm:$0xf]
    %v254 = vld [vmem:[#allocation7 + $0x64] sm:$0xf]
    %v255 = vld [vmem:[#allocation7 + $0x68] sm:$0xf]
    %v256 = vld [vmem:[#allocation7 + $0x6c] sm:$0xf]
    %v257 = vld [vmem:[#allocation7 + $0x70] sm:$0xf]
    %v258 = vld [vmem:[#allocation7 + $0x74] sm:$0xf]
    %v259 = vld [vmem:[#allocation7 + $0x78] sm:$0xf]
    %v260 = vld [vmem:[#allocation7 + $0x7c] sm:$0xf]
    %v261 = vld [vmem:[%s4] sm:$0x1]
    %v263 = vlaneseq
    %v264 = vshrl.u32 %v263, 7
    %v265 = vsub.s32 0, %v264
    %v266 = vrot.slane %v261, %v265
    %v300 = vunpack.c.l.b16 %v229
    %v301 = vunpack.c.l.b16 %v230
    %v302 = vunpack.c.l.b16 %v231
    %v303 = vunpack.c.l.b16 %v232
    %v304 = vunpack.c.l.b16 %v233
    %v305 = vunpack.c.l.b16 %v234
    %v306 = vunpack.c.l.b16 %v235
    %v307 = vunpack.c.l.b16 %v236
    %v308 = vunpack.c.l.b16 %v237
    %v309 = vunpack.c.l.b16 %v238
    %v310 = vunpack.c.l.b16 %v239
    %v311 = vunpack.c.l.b16 %v240
    %v312 = vunpack.c.l.b16 %v241
    %v313 = vunpack.c.l.b16 %v242
    %v314 = vunpack.c.l.b16 %v243
    %v315 = vunpack.c.l.b16 %v244
    %v316 = vunpack.c.l.b16 %v245
    %v317 = vunpack.c.l.b16 %v246
    %v318 = vunpack.c.l.b16 %v247
    %v319 = vunpack.c.l.b16 %v248
    %v320 = vunpack.c.l.b16 %v249
    %v321 = vunpack.c.l.b16 %v250
    %v322 = vunpack.c.l.b16 %v251
    %v323 = vunpack.c.l.b16 %v252
    %v324 = vunpack.c.l.b16 %v253
    %v325 = vunpack.c.l.b16 %v254
    %v326 = vunpack.c.l.b16 %v255
    %v327 = vunpack.c.l.b16 %v256
    %v328 = vunpack.c.l.b16 %v257
    %v329 = vunpack.c.l.b16 %v258
    %v330 = vunpack.c.l.b16 %v259
    %v331 = vunpack.c.l.b16 %v260
    %v332 = vpack.c.b16 %v301, %v300
    %v333 = vpack.c.b16 %v303, %v302
    %v334 = vpack.c.b16 %v305, %v304
    %v335 = vpack.c.b16 %v307, %v306
    %v336 = vpack.c.b16 %v309, %v308
    %v337 = vpack.c.b16 %v311, %v310
    %v338 = vpack.c.b16 %v313, %v312
    %v339 = vpack.c.b16 %v315, %v314
    %v340 = vpack.c.b16 %v317, %v316
    %v341 = vpack.c.b16 %v319, %v318
    %v342 = vpack.c.b16 %v321, %v320
    %v343 = vpack.c.b16 %v323, %v322
    %v344 = vpack.c.b16 %v325, %v324
    %v345 = vpack.c.b16 %v327, %v326
    %v346 = vpack.c.b16 %v329, %v328
    %v347 = vpack.c.b16 %v331, %v330
    %364 = vmatprep.subr.bf16.mxu0 0
    %365 = vmatpush1.bf16.msra.mxu0 %v332
    %366 = vmatprep.subr.bf16.mxu0 0
    %367 = vmatpush1.bf16.msra.mxu0 %v333
    %368 = vmatprep.subr.bf16.mxu0 0
    %369 = vmatpush1.bf16.msra.mxu0 %v334
    %370 = vmatprep.subr.bf16.mxu0 0
    %371 = vmatpush1.bf16.msra.mxu0 %v335
    %372 = vmatprep.subr.bf16.mxu0 0
    %373 = vmatpush1.bf16.msra.mxu0 %v336
    %374 = vmatprep.subr.bf16.mxu0 0
    %375 = vmatpush1.bf16.msra.mxu0 %v337
    %376 = vmatprep.subr.bf16.mxu0 0
    %377 = vmatpush1.bf16.msra.mxu0 %v338
    %378 = vmatprep.subr.bf16.mxu0 0
    %379 = vmatpush1.bf16.msra.mxu0 %v339
    %380 = vmatprep.subr.bf16.mxu0 0
    %381 = vmatpush1.bf16.msra.mxu0 %v340
    %382 = vmatprep.subr.bf16.mxu0 0
    %383 = vmatpush1.bf16.msra.mxu0 %v341
    %384 = vmatprep.subr.bf16.mxu0 0
    %385 = vmatpush1.bf16.msra.mxu0 %v342
    %386 = vmatprep.subr.bf16.mxu0 0
    %387 = vmatpush1.bf16.msra.mxu0 %v343
    %388 = vmatprep.subr.bf16.mxu0 0
    %389 = vmatpush1.bf16.msra.mxu0 %v344
    %390 = vmatprep.subr.bf16.mxu0 0
    %391 = vmatpush1.bf16.msra.mxu0 %v345
    %392 = vmatprep.subr.bf16.mxu0 0
    %393 = vmatpush1.bf16.msra.mxu0 %v346
    %394 = vmatprep.subr.bf16.mxu0 0
    %395 = vmatpush1.bf16.msra.mxu0 %v347
    %396 = vmatprep.mubr.bf16.mxu0 %v228
    %397 = vmatmul.mubr.bf16.gmra.mrb[0].mxu0 %v227
    %v398 = vpop.f32.mrb[0].mxu0
    %v399 = vadd.f32 %v266, %v398
    %v400 = vpop.f32.mrb[0].mxu0
    %v401 = vpop.f32.mrb[0].mxu0
    %v402 = vadd.f32 %v266, %v401
    %v403 = vpop.f32.mrb[0].mxu0
    %404 = vdwg.mxu0
    %v405 = vld [vmem:[%s5] sm:$0x1]
    %v406 = vld [vmem:[%s6] sm:$0x1]
    %v407 = vadd.f32 %v399, %v69
    %v408 = vadd.f32 %v402, %v70
    %409 = vadd.xlane.f32.xlu0 %v407
    %v410 = vpop.xlane.xlu0 %409
    %411 = vadd.xlane.f32.xlu0 %v408
    %v412 = vpop.xlane.xlu0 %411
    %v413 = vmul.f32 %v410, 0.0078125
    %v414 = vmul.f32 %v412, 0.0078125
    %v415 = vsub.f32 %v407, %v413
    %v416 = vsub.f32 %v408, %v414
    %v417 = vmul.f32 %v415, %v415
    %v418 = vmul.f32 %v416, %v416
    %419 = vadd.xlane.f32.xlu0 %v417
    %v420 = vpop.xlane.xlu0 %419
    %421 = vadd.xlane.f32.xlu0 %v418
    %v422 = vpop.xlane.xlu0 %421
    %v423 = vmul.f32 %v420, 0.007874016
    %v424 = vmul.f32 %v422, 0.007874016
    %v425 = vrsqrt.pop %v423
    %v426 = vmul.f32 %v423, %v425
    %vm427 = vcmp.eq.f32.partialorder %v423, inf
    %v428 = vsel %vm427, %v423, %v426
    %vm429 = vcmp.eq.f32.partialorder %v423, 0.0
    %v430 = vand.u32 %v423, 2147483648
    %v431 = vsel %vm429, %v430, %v428
    %v432 = vrsqrt.pop %v424
    %v433 = vmul.f32 %v424, %v432
    %vm434 = vcmp.eq.f32.partialorder %v424, inf
    %v435 = vsel %vm434, %v424, %v433
    %vm436 = vcmp.eq.f32.partialorder %v424, 0.0
    %v437 = vand.u32 %v424, 2147483648
    %v438 = vsel %vm436, %v437, %v435
    %v439 = vadd.f32 %v431, 0.001
    %v440 = vadd.f32 %v438, 0.001
    %v441 = vrcp.pop %v439
    %v442 = vrcp.pop %v440
    %v443 = vmul.f32 %v439, %v441
    %v444 = vmul.f32 %v440, %v442
    %v445 = vsub.f32 2.0, %v443
    %v446 = vsub.f32 2.0, %v444
    %v447 = vmul.f32 %v441, %v445
    %v448 = vmul.f32 %v442, %v446
    %v449 = vmul.f32 %v415, %v447
    %v450 = vmul.f32 %v416, %v448
    %v452 = vlaneseq
    %v453 = vshrl.u32 %v452, 7
    %v454 = vsub.s32 0, %v453
    %v455 = vrot.slane %v405, %v454
    %v457 = vmul.f32 %v449, %v455
    %v458 = vmul.f32 %v450, %v455
    %v460 = vlaneseq
    %v461 = vshrl.u32 %v460, 7
    %v462 = vsub.s32 0, %v461
    %v463 = vrot.slane %v406, %v462
    %v465 = vadd.f32 %v457, %v463
    %v466 = vadd.f32 %v458, %v463
    %467 = vst [vmem:[#allocation8] sm:$0xff] %v465
    %468 = vst [vmem:[#allocation8 + $0x8] sm:$0xff] %v466
    // Predicated region
    $region42: #{tpu_custom_call.1} parent=1 // pred_check
      _
    $region43: #{tpu_custom_call.1} parent=1 // pred_check_branch
      %470 = sbr.rel (0) target = $region45
    $region44: #{tpu_custom_call.1} parent=1 // pred_region
      %s472 = ssub.s32 256, 256
      %473 = vsyncadd [#allocation4], %s472
      %s474 = sshll.u32 [#allocation8], 4
      %s475 = int_to_ptr.vmem [resolvable:$true] %s474
      %480 = dma.vmem_to_hbm [thread:$0]  %s475, 256, %s7, [#allocation4], 128, 128, 8
    $region45: #{tpu_custom_call.1} parent=1 // pred_fallthru
      _
    // Predicated region
    $region46: #{tpu_custom_call.1} parent=1 // pred_check
      _
    $region47: #{tpu_custom_call.1} parent=1 // pred_check_branch
      %482 = sbr.rel (0) target = $region49
    $region48: #{tpu_custom_call.1} parent=1 // pred_region
      %483 = dma.done [#allocation4], 256
    $region49: #{tpu_custom_call.1} parent=1 // pred_fallthru
      _
    %484 = vsyncpa [#allocation3], 1
    %485 = vsyncpa [#allocation6], 1
    %486 = vsyncpa [#allocation4], 1

// kernel: tpu_custom_call.1
$region0: #{tpu_custom_call.1}
  #allocation0 [shape = 'u32[]', space=smem, size = 0x4, offset = 0x4, fixed_abs, tag = 'smem constant byte address 0x4 - core index']
  #allocation1 [shape = 'u32[144,128]{1,0:T(1,128)}', space=vmem, size = 0x12000, scoped, tag = 'internal scratch']
  %s0 = inlined_call_operand.hbm [shape: f32[16,128], index: 0, kind: input, shape index: {}]
  %s1 = inlined_call_operand.hbm [shape: bf16[128,256], index: 1, kind: input, shape index: {}]
  %s2 = inlined_call_operand.vmem [shape: f32[1,256], index: 2, kind: input, shape index: {}]
  %s3 = inlined_call_operand.hbm [shape: bf16[256,128], index: 3, kind: input, shape index: {}]
  %s4 = inlined_call_operand.vmem [shape: f32[1,128], index: 4, kind: input, shape index: {}]
  %s5 = inlined_call_operand.vmem [shape: f32[1,128], index: 5, kind: input, shape index: {}]
  %s6 = inlined_call_operand.vmem [shape: f32[1,128], index: 6, kind: input, shape index: {}]
  %s7 = inlined_call_operand.hbm [shape: f32[16,128], index: 7, kind: output, shape index: {}]
  %s8 = sld [smem:[#allocation0]]
  $region50: #{tpu_custom_call.1} parent=0
    _
  %s10 = ssub.s32 1, %s8
  %s11 = scalar_select 0, %s10, %s8
  $region1: #{tpu_custom_call.1} parent=0
    #allocation2 [shape = 'u8[8192]{0}', space=vmem, size = 0x2000, scoped, tag = 'input window, operand 0, single buffered']
    #allocation3 [shape = 's32[1]{0}', space=sflag, size = 0x4, scoped, tag = 'scoped memory for tpu_custom_call.1']
    #allocation4 [shape = 's32[1]{0}', space=sflag, size = 0x4, scoped, tag = 'scoped memory for tpu_custom_call.1']
    #allocation5 [shape = 'u8[65536]{0}', space=vmem, size = 0x10000, scoped, tag = 'input window, operand 1, single buffered']
    #allocation6 [shape = 's32[1]{0}', space=sflag, size = 0x4, scoped, tag = 'scoped memory for tpu_custom_call.1']
    #allocation7 [shape = 'u8[65536]{0}', space=vmem, size = 0x10000, scoped, tag = 'input window, operand 3, single buffered']
    #allocation8 [shape = 'u8[8192]{0}', space=vmem, size = 0x2000, scoped, tag = 'output window, operand 0, single buffered']
    %12 = vsyncpa [#allocation3], 0
    %13 = vsyncpa [#allocation6], 0
    %14 = vsyncpa [#allocation4], 0
    // Predicated region
    $region2: #{tpu_custom_call.1} parent=1 // pred_check
      _
    $region3: #{tpu_custom_call.1} parent=1 // pred_check_branch
      %16 = sbr.rel (0) target = $region5
    $region4: #{tpu_custom_call.1} parent=1 // pred_region
      %s18 = ssub.s32 256, 256
      %19 = vsyncadd [#allocation3], %s18
      %s20 = sshll.u32 [#allocation2], 4
      %s21 = int_to_ptr.vmem [resolvable:$true] %s20
      %26 = dma.hbm_to_vmem [thread:$0]  %s0, 256, %s21, [#allocation3], 128, 128, 8
    $region5: #{tpu_custom_call.1} parent=1 // pred_fallthru
      _
    // Predicated region
    $region6: #{tpu_custom_call.1} parent=1 // pred_check
      _
    $region7: #{tpu_custom_call.1} parent=1 // pred_check_branch
      %28 = sbr.rel (0) target = $region9
    $region8: #{tpu_custom_call.1} parent=1 // pred_region
      %s30 = ssub.s32 2048, 2048
      %31 = vsyncadd [#allocation6], %s30
      %s32 = sshll.u32 [#allocation5], 4
      %s33 = int_to_ptr.vmem [resolvable:$true] %s32
      %38 = dma.hbm_to_vmem [thread:$0]  %s1, 2048, %s33, [#allocation6], 128, 128, 8
    $region9: #{tpu_custom_call.1} parent=1 // pred_fallthru
      _
    // Predicated region
    $region10: #{tpu_custom_call.1} parent=1 // pred_check
      _
    $region11: #{tpu_custom_call.1} parent=1 // pred_check_branch
      %40 = sbr.rel (0) target = $region13
    $region12: #{tpu_custom_call.1} parent=1 // pred_region
      _
    $region13: #{tpu_custom_call.1} parent=1 // pred_fallthru
      _
    // Predicated region
    $region14: #{tpu_custom_call.1} parent=1 // pred_check
      _
    $region15: #{tpu_custom_call.1} parent=1 // pred_check_branch
      %42 = sbr.rel (0) target = $region17
    $region16: #{tpu_custom_call.1} parent=1 // pred_region
      %s44 = ssub.s32 2048, 2048
      %45 = vsyncadd [#allocation6], %s44
      %s46 = sshll.u32 [#allocation7], 4
      %s47 = int_to_ptr.vmem [resolvable:$true] %s46
      %52 = dma.hbm_to_vmem [thread:$0]  %s3, 2048, %s47, [#allocation6], 64, 64, 4
    $region17: #{tpu_custom_call.1} parent=1 // pred_fallthru
      _
    // Predicated region
    $region18: #{tpu_custom_call.1} parent=1 // pred_check
      _
    $region19: #{tpu_custom_call.1} parent=1 // pred_check_branch
      %54 = sbr.rel (0) target = $region21
    $region20: #{tpu_custom_call.1} parent=1 // pred_region
      _
    $region21: #{tpu_custom_call.1} parent=1 // pred_fallthru
      _
    // Predicated region
    $region22: #{tpu_custom_call.1} parent=1 // pred_check
      _
    $region23: #{tpu_custom_call.1} parent=1 // pred_check_branch
      %56 = sbr.rel (0) target = $region25
    $region24: #{tpu_custom_call.1} parent=1 // pred_region
      _
    $region25: #{tpu_custom_call.1} parent=1 // pred_fallthru
      _
    // Predicated region
    $region26: #{tpu_custom_call.1} parent=1 // pred_check
      _
    $region27: #{tpu_custom_call.1} parent=1 // pred_check_branch
      %58 = sbr.rel (0) target = $region29
    $region28: #{tpu_custom_call.1} parent=1 // pred_region
      _
    $region29: #{tpu_custom_call.1} parent=1 // pred_fallthru
      _
    // Predicated region
    $region30: #{tpu_custom_call.1} parent=1 // pred_check
      _
    $region31: #{tpu_custom_call.1} parent=1 // pred_check_branch
      %60 = sbr.rel (0) target = $region33
    $region32: #{tpu_custom_call.1} parent=1 // pred_region
      %61 = dma.done [#allocation3], 256
    $region33: #{tpu_custom_call.1} parent=1 // pred_fallthru
      _
    // Predicated region
    $region34: #{tpu_custom_call.1} parent=1 // pred_check
      _
    $region35: #{tpu_custom_call.1} parent=1 // pred_check_branch
      %63 = sbr.rel (0) target = $region37
    $region36: #{tpu_custom_call.1} parent=1 // pred_region
      %64 = dma.done [#allocation6], 2048
    $region37: #{tpu_custom_call.1} parent=1 // pred_fallthru
      _
    // Predicated region
    $region38: #{tpu_custom_call.1} parent=1 // pred_check
      _
    $region39: #{tpu_custom_call.1} parent=1 // pred_check_branch
      %66 = sbr.rel (0) target = $region41
    $region40: #{tpu_custom_call.1} parent=1 // pred_region
      %67 = dma.done [#allocation6], 2048
    $region41: #{tpu_custom_call.1} parent=1 // pred_fallthru
      _
    %v69 = vld [vmem:[#allocation2] sm:$0xff]
    %v70 = vld [vmem:[#allocation2 + $0x8] sm:$0xff]
    %v71 = vpack.c.bf16 %v70, %v69
    %v72 = vld [vmem:[#allocation5] sm:$0xff]
    %v73 = vld [vmem:[#allocation5 + $0x8] sm:$0xff]
    %v74 = vld [vmem:[#allocation5 + $0x10] sm:$0xff]
    %v75 = vld [vmem:[#allocation5 + $0x18] sm:$0xff]
    %v76 = vld [vmem:[#allocation5 + $0x20] sm:$0xff]
    %v77 = vld [vmem:[#allocation5 + $0x28] sm:$0xff]
    %v78 = vld [vmem:[#allocation5 + $0x30] sm:$0xff]
    %v79 = vld [vmem:[#allocation5 + $0x38] sm:$0xff]
    %v80 = vld [vmem:[#allocation5 + $0x40] sm:$0xff]
    %v81 = vld [vmem:[#allocation5 + $0x48] sm:$0xff]
    %v82 = vld [vmem:[#allocation5 + $0x50] sm:$0xff]
    %v83 = vld [vmem:[#allocation5 + $0x58] sm:$0xff]
    %v84 = vld [vmem:[#allocation5 + $0x60] sm:$0xff]
    %v85 = vld [vmem:[#allocation5 + $0x68] sm:$0xff]
    %v86 = vld [vmem:[#allocation5 + $0x70] sm:$0xff]
    %v87 = vld [vmem:[#allocation5 + $0x78] sm:$0xff]
    %v88 = vld [vmem:[%s2] sm:$0x3]
    %v90 = vlaneseq
    %v91 = vshrl.u32 %v90, 7
    %v92 = vsub.s32 0, %v91
    %v93 = vrot.slane %v88, %v92
    %v94 = vlaneseq
    %v95 = vshrl.u32 %v94, 7
    %v96 = vsub.s32 1, %v95
    %v97 = vrot.slane %v88, %v96
    %v116 = vunpack.c.l.b16 %v72
    %v117 = vunpack.c.h.b16 %v72
    %v118 = vunpack.c.l.b16 %v73
    %v119 = vunpack.c.h.b16 %v73
    %v120 = vunpack.c.l.b16 %v74
    %v121 = vunpack.c.h.b16 %v74
    %v122 = vunpack.c.l.b16 %v75
    %v123 = vunpack.c.h.b16 %v75
    %v124 = vunpack.c.l.b16 %v76
    %v125 = vunpack.c.h.b16 %v76
    %v126 = vunpack.c.l.b16 %v77
    %v127 = vunpack.c.h.b16 %v77
    %v128 = vunpack.c.l.b16 %v78
    %v129 = vunpack.c.h.b16 %v78
    %v130 = vunpack.c.l.b16 %v79
    %v131 = vunpack.c.h.b16 %v79
    %v132 = vunpack.c.l.b16 %v80
    %v133 = vunpack.c.h.b16 %v80
    %v134 = vunpack.c.l.b16 %v81
    %v135 = vunpack.c.h.b16 %v81
    %v136 = vunpack.c.l.b16 %v82
    %v137 = vunpack.c.h.b16 %v82
    %v138 = vunpack.c.l.b16 %v83
    %v139 = vunpack.c.h.b16 %v83
    %v140 = vunpack.c.l.b16 %v84
    %v141 = vunpack.c.h.b16 %v84
    %v142 = vunpack.c.l.b16 %v85
    %v143 = vunpack.c.h.b16 %v85
    %v144 = vunpack.c.l.b16 %v86
    %v145 = vunpack.c.h.b16 %v86
    %v146 = vunpack.c.l.b16 %v87
    %v147 = vunpack.c.h.b16 %v87
    %v148 = vpack.c.b16 %v118, %v116
    %v149 = vpack.c.b16 %v119, %v117
    %v150 = vpack.c.b16 %v122, %v120
    %v151 = vpack.c.b16 %v123, %v121
    %v152 = vpack.c.b16 %v126, %v124
    %v153 = vpack.c.b16 %v127, %v125
    %v154 = vpack.c.b16 %v130, %v128
    %v155 = vpack.c.b16 %v131, %v129
    %v156 = vpack.c.b16 %v134, %v132
    %v157 = vpack.c.b16 %v135, %v133
    %v158 = vpack.c.b16 %v138, %v136
    %v159 = vpack.c.b16 %v139, %v137
    %v160 = vpack.c.b16 %v142, %v140
    %v161 = vpack.c.b16 %v143, %v141
    %v162 = vpack.c.b16 %v146, %v144
    %v163 = vpack.c.b16 %v147, %v145
    %180 = vmatprep.subr.bf16.mxu0 %v149
    %181 = vmatpush1.bf16.msra.mxu0 %v148
    %182 = vmatprep.subr.bf16.mxu0 %v151
    %183 = vmatpush1.bf16.msra.mxu0 %v150
    %184 = vmatprep.subr.bf16.mxu0 %v153
    %185 = vmatpush1.bf16.msra.mxu0 %v152
    %186 = vmatprep.subr.bf16.mxu0 %v155
    %187 = vmatpush1.bf16.msra.mxu0 %v154
    %188 = vmatprep.subr.bf16.mxu0 %v157
    %189 = vmatpush1.bf16.msra.mxu0 %v156
    %190 = vmatprep.subr.bf16.mxu0 %v159
    %191 = vmatpush1.bf16.msra.mxu0 %v158
    %192 = vmatprep.subr.bf16.mxu0 %v161
    %193 = vmatpush1.bf16.msra.mxu0 %v160
    %194 = vmatprep.subr.bf16.mxu0 %v163
    %195 = vmatpush1.bf16.msra.mxu0 %v162
    %196 = vmatprep.subr.bf16.mxu0 0
    %197 = vmatpush1.bf16.msra.mxu0 0
    %198 = vmatprep.subr.bf16.mxu0 0
    %199 = vmatpush1.bf16.msra.mxu0 0
    %200 = vmatprep.subr.bf16.mxu0 0
    %201 = vmatpush1.bf16.msra.mxu0 0
    %202 = vmatprep.subr.bf16.mxu0 0
    %203 = vmatpush1.bf16.msra.mxu0 0
    %204 = vmatprep.subr.bf16.mxu0 0
    %205 = vmatpush1.bf16.msra.mxu0 0
    %206 = vmatprep.subr.bf16.mxu0 0
    %207 = vmatpush1.bf16.msra.mxu0 0
    %208 = vmatprep.subr.bf16.mxu0 0
    %209 = vmatpush1.bf16.msra.mxu0 0
    %210 = vmatprep.subr.bf16.mxu0 0
    %211 = vmatpush1.bf16.msra.mxu0 0
    %212 = vmatprep.mubr.bf16.mxu0 0
    %213 = vmatmul.mubr.bf16.gmra.mrb[0].mxu0 %v71
    %v214 = vpop.f32.mrb[0].mxu0
    %v215 = vadd.f32 %v93, %v214
    %v216 = vpop.f32.mrb[0].mxu0
    %v217 = vadd.f32 %v97, %v216
    %v218 = vpop.f32.mrb[0].mxu0
    %v219 = vadd.f32 %v93, %v218
    %v220 = vpop.f32.mrb[0].mxu0
    %v221 = vadd.f32 %v97, %v220
    %222 = vdwg.mxu0
    %v223 = vmax.f32 %v215, 0.0
    %v224 = vmax.f32 %v217, 0.0
    %v225 = vmax.f32 %v219, 0.0
    %v226 = vmax.f32 %v221, 0.0
    %v227 = vpack.c.bf16 %v225, %v223
    %v228 = vpack.c.bf16 %v226, %v224
    %v229 = vld [vmem:[#allocation7] sm:$0xf]
    %v230 = vld [vmem:[#allocation7 + $0x4] sm:$0xf]
    %v231 = vld [vmem:[#allocation7 + $0x8] sm:$0xf]
    %v232 = vld [vmem:[#allocation7 + $0xc] sm:$0xf]
    %v233 = vld [vmem:[#allocation7 + $0x10] sm:$0xf]
    %v234 = vld [vmem:[#allocation7 + $0x14] sm:$0xf]
    %v235 = vld [vmem:[#allocation7 + $0x18] sm:$0xf]
    %v236 = vld [vmem:[#allocation7 + $0x1c] sm:$0xf]
    %v237 = vld [vmem:[#allocation7 + $0x20] sm:$0xf]
    %v238 = vld [vmem:[#allocation7 + $0x24] sm:$0xf]
    %v239 = vld [vmem:[#allocation7 + $0x28] sm:$0xf]
    %v240 = vld [vmem:[#allocation7 + $0x2c] sm:$0xf]
    %v241 = vld [vmem:[#allocation7 + $0x30] sm:$0xf]
    %v242 = vld [vmem:[#allocation7 + $0x34] sm:$0xf]
    %v243 = vld [vmem:[#allocation7 + $0x38] sm:$0xf]
    %v244 = vld [vmem:[#allocation7 + $0x3c] sm:$0xf]
    %v245 = vld [vmem:[#allocation7 + $0x40] sm:$0xf]
    %v246 = vld [vmem:[#allocation7 + $0x44] sm:$0xf]
    %v247 = vld [vmem:[#allocation7 + $0x48] sm:$0xf]
    %v248 = vld [vmem:[#allocation7 + $0x4c] sm:$0xf]
    %v249 = vld [vmem:[#allocation7 + $0x50] sm:$0xf]
    %v250 = vld [vmem:[#allocation7 + $0x54] sm:$0xf]
    %v251 = vld [vmem:[#allocation7 + $0x58] sm:$0xf]
    %v252 = vld [vmem:[#allocation7 + $0x5c] sm:$0xf]
    %v253 = vld [vmem:[#allocation7 + $0x60] sm:$0xf]
    %v254 = vld [vmem:[#allocation7 + $0x64] sm:$0xf]
    %v255 = vld [vmem:[#allocation7 + $0x68] sm:$0xf]
    %v256 = vld [vmem:[#allocation7 + $0x6c] sm:$0xf]
    %v257 = vld [vmem:[#allocation7 + $0x70] sm:$0xf]
    %v258 = vld [vmem:[#allocation7 + $0x74] sm:$0xf]
    %v259 = vld [vmem:[#allocation7 + $0x78] sm:$0xf]
    %v260 = vld [vmem:[#allocation7 + $0x7c] sm:$0xf]
    %v261 = vld [vmem:[%s4] sm:$0x1]
    %v263 = vlaneseq
    %v264 = vshrl.u32 %v263, 7
    %v265 = vsub.s32 0, %v264
    %v266 = vrot.slane %v261, %v265
    %v300 = vunpack.c.l.b16 %v229
    %v301 = vunpack.c.l.b16 %v230
    %v302 = vunpack.c.l.b16 %v231
    %v303 = vunpack.c.l.b16 %v232
    %v304 = vunpack.c.l.b16 %v233
    %v305 = vunpack.c.l.b16 %v234
    %v306 = vunpack.c.l.b16 %v235
    %v307 = vunpack.c.l.b16 %v236
    %v308 = vunpack.c.l.b16 %v237
    %v309 = vunpack.c.l.b16 %v238
    %v310 = vunpack.c.l.b16 %v239
    %v311 = vunpack.c.l.b16 %v240
    %v312 = vunpack.c.l.b16 %v241
    %v313 = vunpack.c.l.b16 %v242
    %v314 = vunpack.c.l.b16 %v243
    %v315 = vunpack.c.l.b16 %v244
    %v316 = vunpack.c.l.b16 %v245
    %v317 = vunpack.c.l.b16 %v246
    %v318 = vunpack.c.l.b16 %v247
    %v319 = vunpack.c.l.b16 %v248
    %v320 = vunpack.c.l.b16 %v249
    %v321 = vunpack.c.l.b16 %v250
    %v322 = vunpack.c.l.b16 %v251
    %v323 = vunpack.c.l.b16 %v252
    %v324 = vunpack.c.l.b16 %v253
    %v325 = vunpack.c.l.b16 %v254
    %v326 = vunpack.c.l.b16 %v255
    %v327 = vunpack.c.l.b16 %v256
    %v328 = vunpack.c.l.b16 %v257
    %v329 = vunpack.c.l.b16 %v258
    %v330 = vunpack.c.l.b16 %v259
    %v331 = vunpack.c.l.b16 %v260
    %v332 = vpack.c.b16 %v301, %v300
    %v333 = vpack.c.b16 %v303, %v302
    %v334 = vpack.c.b16 %v305, %v304
    %v335 = vpack.c.b16 %v307, %v306
    %v336 = vpack.c.b16 %v309, %v308
    %v337 = vpack.c.b16 %v311, %v310
    %v338 = vpack.c.b16 %v313, %v312
    %v339 = vpack.c.b16 %v315, %v314
    %v340 = vpack.c.b16 %v317, %v316
    %v341 = vpack.c.b16 %v319, %v318
    %v342 = vpack.c.b16 %v321, %v320
    %v343 = vpack.c.b16 %v323, %v322
    %v344 = vpack.c.b16 %v325, %v324
    %v345 = vpack.c.b16 %v327, %v326
    %v346 = vpack.c.b16 %v329, %v328
    %v347 = vpack.c.b16 %v331, %v330
    %364 = vmatprep.subr.bf16.mxu0 0
    %365 = vmatpush1.bf16.msra.mxu0 %v332
    %366 = vmatprep.subr.bf16.mxu0 0
    %367 = vmatpush1.bf16.msra.mxu0 %v333
    %368 = vmatprep.subr.bf16.mxu0 0
    %369 = vmatpush1.bf16.msra.mxu0 %v334
    %370 = vmatprep.subr.bf16.mxu0 0
    %371 = vmatpush1.bf16.msra.mxu0 %v335
    %372 = vmatprep.subr.bf16.mxu0 0
    %373 = vmatpush1.bf16.msra.mxu0 %v336
    %374 = vmatprep.subr.bf16.mxu0 0
    %375 = vmatpush1.bf16.msra.mxu0 %v337
    %376 = vmatprep.subr.bf16.mxu0 0
    %377 = vmatpush1.bf16.msra.mxu0 %v338
    %378 = vmatprep.subr.bf16.mxu0 0
    %379 = vmatpush1.bf16.msra.mxu0 %v339
    %380 = vmatprep.subr.bf16.mxu0 0
    %381 = vmatpush1.bf16.msra.mxu0 %v340
    %382 = vmatprep.subr.bf16.mxu0 0
    %383 = vmatpush1.bf16.msra.mxu0 %v341
    %384 = vmatprep.subr.bf16.mxu0 0
    %385 = vmatpush1.bf16.msra.mxu0 %v342
    %386 = vmatprep.subr.bf16.mxu0 0
    %387 = vmatpush1.bf16.msra.mxu0 %v343
    %388 = vmatprep.subr.bf16.mxu0 0
    %389 = vmatpush1.bf16.msra.mxu0 %v344
    %390 = vmatprep.subr.bf16.mxu0 0
    %391 = vmatpush1.bf16.msra.mxu0 %v345
    %392 = vmatprep.subr.bf16.mxu0 0
    %393 = vmatpush1.bf16.msra.mxu0 %v346
    %394 = vmatprep.subr.bf16.mxu0 0
    %395 = vmatpush1.bf16.msra.mxu0 %v347
    %396 = vmatprep.mubr.bf16.mxu0 %v228
    %397 = vmatmul.mubr.bf16.gmra.mrb[0].mxu0 %v227
    %v398 = vpop.f32.mrb[0].mxu0
    %v399 = vadd.f32 %v266, %v398
    %v400 = vpop.f32.mrb[0].mxu0
    %v401 = vpop.f32.mrb[0].mxu0
    %v402 = vadd.f32 %v266, %v401
    %v403 = vpop.f32.mrb[0].mxu0
    %404 = vdwg.mxu0
    %v405 = vld [vmem:[%s5] sm:$0x1]
    %v406 = vld [vmem:[%s6] sm:$0x1]
    %v407 = vadd.f32 %v399, %v69
    %v408 = vadd.f32 %v402, %v70
    %409 = vadd.xlane.f32.xlu0 %v407
    %v410 = vpop.xlane.xlu0 %409
    %411 = vadd.xlane.f32.xlu0 %v408
    %v412 = vpop.xlane.xlu0 %411
    %v413 = vmul.f32 %v410, 0.0078125
    %v414 = vmul.f32 %v412, 0.0078125
    %v415 = vsub.f32 %v407, %v413
    %v416 = vsub.f32 %v408, %v414
    %v417 = vmul.f32 %v415, %v415
    %v418 = vmul.f32 %v416, %v416
    %419 = vadd.xlane.f32.xlu0 %v417
    %v420 = vpop.xlane.xlu0 %419
    %421 = vadd.xlane.f32.xlu0 %v418
    %v422 = vpop.xlane.xlu0 %421
    %v423 = vmul.f32 %v420, 0.007874016
    %v424 = vmul.f32 %v422, 0.007874016
    %v425 = vrsqrt.pop %v423
    %v426 = vmul.f32 %v423, %v425
    %vm427 = vcmp.eq.f32.partialorder %v423, inf
    %v428 = vsel %vm427, %v423, %v426
    %vm429 = vcmp.eq.f32.partialorder %v423, 0.0
    %v430 = vand.u32 %v423, 2147483648
    %v431 = vsel %vm429, %v430, %v428
    %v432 = vrsqrt.pop %v424
    %v433 = vmul.f32 %v424, %v432
    %vm434 = vcmp.eq.f32.partialorder %v424, inf
    %v435 = vsel %vm434, %v424, %v433
    %vm436 = vcmp.eq.f32.partialorder %v424, 0.0
    %v437 = vand.u32 %v424, 2147483648
    %v438 = vsel %vm436, %v437, %v435
    %v439 = vadd.f32 %v431, 0.001
    %v440 = vadd.f32 %v438, 0.001
    %v441 = vrcp.pop %v439
    %v442 = vrcp.pop %v440
    %v443 = vmul.f32 %v439, %v441
    %v444 = vmul.f32 %v440, %v442
    %v445 = vsub.f32 2.0, %v443
    %v446 = vsub.f32 2.0, %v444
    %v447 = vmul.f32 %v441, %v445
    %v448 = vmul.f32 %v442, %v446
    %v449 = vmul.f32 %v415, %v447
    %v450 = vmul.f32 %v416, %v448
    %v452 = vlaneseq
    %v453 = vshrl.u32 %v452, 7
    %v454 = vsub.s32 0, %v453
    %v455 = vrot.slane %v405, %v454
    %v457 = vmul.f32 %v449, %v455
    %v458 = vmul.f32 %v450, %v455
    %v460 = vlaneseq
    %v461 = vshrl.u32 %v460, 7
    %v462 = vsub.s32 0, %v461
    %v463 = vrot.slane %v406, %v462
    %v465 = vadd.f32 %v457, %v463
    %v466 = vadd.f32 %v458, %v463
    %467 = vst [vmem:[#allocation8] sm:$0xff] %v465
    %468 = vst [vmem:[#allocation8 + $0x8] sm:$0xff] %v466
    // Predicated region
    $region42: #{tpu_custom_call.1} parent=1 // pred_check
      _
    $region43: #{tpu_custom_call.1} parent=1 // pred_check_branch
      %470 = sbr.rel (0) target = $region45
    $region44: #{tpu_custom_call.1} parent=1 // pred_region
      %s472 = ssub.s32 256, 256
      %473 = vsyncadd [#allocation4], %s472
      %s474 = sshll.u32 [#allocation8], 4
      %s475 = int_to_ptr.vmem [resolvable:$true] %s474
      %480 = dma.vmem_to_hbm [thread:$0]  %s475, 256, %s7, [#allocation4], 128, 128, 8
    $region45: #{tpu_custom_call.1} parent=1 // pred_fallthru
      _
    // Predicated region
    $region46: #{tpu_custom_call.1} parent=1 // pred_check
      _
    $region47: #{tpu_custom_call.1} parent=1 // pred_check_branch
      %482 = sbr.rel (0) target = $region49
    $region48: #{tpu_custom_call.1} parent=1 // pred_region
      %483 = dma.done [#allocation4], 256
    $region49: #{tpu_custom_call.1} parent=1 // pred_fallthru
      _
    %484 = vsyncpa [#allocation3], 1
    %485 = vsyncpa [#allocation6], 1
    %486 = vsyncpa [#allocation4], 1

</llo_original>
